<compile_context>
chip_gen: v5e
topology: v5e:2x2
jax: 0.10.0
libtpu: 0.0.40
codegen_flags: <defaults>
</compile_context>

<pallas_src>
import jax
import jax.numpy as jnp
from jax.experimental import pallas as pl
from jax.experimental.pallas import tpu as pltpu

_S, _D = 2, 2  # seq = 2, in_features = 2 (hard-coded, matching the PyTorch module)


def _fused_linear_permute_kernel(x1_ref, x2_ref, x3_ref, x4_ref, w_ref, b_ref, o_ref):
    """x*_ref: (4,) f32 SMEM (row-major (2,2)); w_ref: (2,); b_ref: (1,);
    o_ref: (1, 2, 2) f32 VMEM (full-array block)."""
    w0 = w_ref[0]
    w1 = w_ref[1]
    b = b_ref[0]

    # v1 rows: needed both as the row (i) term and as the transposed column (j) term.
    v1_0 = x1_ref[0] * w0 + x1_ref[1] * w1 + b
    v1_1 = x1_ref[2] * w0 + x1_ref[3] * w1 + b

    # Linearity: v3 + v4 + v5 = (x2 + x3 + x4) @ W^T + 3*b (bias added once per linear).
    s0 = x2_ref[0] + x3_ref[0] + x4_ref[0]
    s1 = x2_ref[1] + x3_ref[1] + x4_ref[1]
    s2 = x2_ref[2] + x3_ref[2] + x4_ref[2]
    s3 = x2_ref[3] + x3_ref[3] + x4_ref[3]
    sum_0 = s0 * w0 + s1 * w1 + 3.0 * b
    sum_1 = s2 * w0 + s3 * w1 + 3.0 * b

    # out[0, i, j] = (v1[i] + v3[i] + v4[i] + v5[i]) + v1[j]
    c0 = v1_0 + sum_0
    c1 = v1_1 + sum_1

    row_ids = jax.lax.broadcasted_iota(jnp.int32, (1, _S, _S), 1)  # i
    col_ids = jax.lax.broadcasted_iota(jnp.int32, (1, _S, _S), 2)  # j
    out = jnp.where(row_ids == 0, c0, c1) + jnp.where(col_ids == 0, v1_0, v1_1)
    o_ref[...] = out.astype(o_ref.dtype)


@jax.jit
def model_forward(x1, x2, x3, x4, weight, bias):
    """JAX/Pallas equivalent of Model.forward.

    x*: (1, 2, 2) f32, weight: (1, 2) f32, bias: (1,) f32 -> (1, 2, 2) f32.
    """
    assert x1.shape == (1, _S, _D) and x2.shape == (1, _S, _D)
    assert x3.shape == (1, _S, _D) and x4.shape == (1, _S, _D)
    assert weight.shape == (1, _D) and bias.shape == (1,)

    # Flatten to 1-D (bitcast-only reshapes, no extra fusion) so the tiny SMEM
    # refs don't get padded to (8, 128) word tiles.
    flat = lambda a: a.reshape(-1).astype(jnp.float32)

    return pl.pallas_call(
        _fused_linear_permute_kernel,
        out_shape=jax.ShapeDtypeStruct((1, _S, _S), jnp.float32),
        in_specs=[pl.BlockSpec(memory_space=pltpu.MemorySpace.SMEM)] * 6,
        out_specs=pl.BlockSpec(memory_space=pltpu.MemorySpace.VMEM),
        cost_estimate=pl.CostEstimate(flops=40, bytes_accessed=92, transcendentals=0),
    )(flat(x1), flat(x2), flat(x3), flat(x4), flat(weight), flat(bias))


if __name__ == "__main__":
    key = jax.random.PRNGKey(0)
    k1, k2, k3, k4, kw, kb = jax.random.split(key, 6)

    # Inputs match the PyTorch module: four tensors of shape (1, 2, 2).
    x1 = jax.random.normal(k1, (1, 2, 2), dtype=jnp.float32)
    x2 = jax.random.normal(k2, (1, 2, 2), dtype=jnp.float32)
    x3 = jax.random.normal(k3, (1, 2, 2), dtype=jnp.float32)
    x4 = jax.random.normal(k4, (1, 2, 2), dtype=jnp.float32)

    # Deterministic Linear(2, 1) parameters (torch-style uniform init range).
    bound = 1.0 / jnp.sqrt(2.0)
    weight = jax.random.uniform(kw, (1, 2), jnp.float32, -bound, bound)
    bias = jax.random.uniform(kb, (1,), jnp.float32, -bound, bound)

    out = model_forward(x1, x2, x3, x4, weight, bias)
    jax.block_until_ready(out)

    # Pure-JAX reference check.
    def ref(x):
        return jnp.einsum("bsd,od->bso", x, weight) + bias

    v1 = ref(x1)
    expected = v1 + jnp.transpose(v1, (0, 2, 1)) + ref(x2) + ref(x3) + ref(x4)
    assert out.shape == (1, 2, 2)
    assert jnp.allclose(out, expected, atol=1e-5, rtol=1e-5)

    print("KERNEL_OK")
</pallas_src>

<mosaic_0001>
module attributes {stable_mosaic.version = 11 : i64} {
  func.func @_fused_linear_permute_kernel(%arg0: memref<4xf32, #tpu.memory_space<smem>>, %arg1: memref<4xf32, #tpu.memory_space<smem>>, %arg2: memref<4xf32, #tpu.memory_space<smem>>, %arg3: memref<4xf32, #tpu.memory_space<smem>>, %arg4: memref<2xf32, #tpu.memory_space<smem>>, %arg5: memref<1xf32, #tpu.memory_space<smem>>, %arg6: memref<1x2x2xf32, #tpu.memory_space<vmem>>) attributes {dimension_semantics = [], scalar_prefetch = 0 : i64, scratch_operands = 0 : i64, tpu.core_type = #tpu.core_type<tc>} {
    %c0 = arith.constant 0 : index
    %0 = memref.load %arg4[%c0] : memref<2xf32, #tpu.memory_space<smem>>
    %c1 = arith.constant 1 : index
    %1 = memref.load %arg4[%c1] : memref<2xf32, #tpu.memory_space<smem>>
    %c0_0 = arith.constant 0 : index
    %2 = memref.load %arg5[%c0_0] : memref<1xf32, #tpu.memory_space<smem>>
    %c0_1 = arith.constant 0 : index
    %3 = memref.load %arg0[%c0_1] : memref<4xf32, #tpu.memory_space<smem>>
    %4 = arith.mulf %3, %0 : f32
    %c1_2 = arith.constant 1 : index
    %5 = memref.load %arg0[%c1_2] : memref<4xf32, #tpu.memory_space<smem>>
    %6 = arith.mulf %5, %1 : f32
    %7 = arith.addf %4, %6 : f32
    %8 = arith.addf %7, %2 : f32
    %c2 = arith.constant 2 : index
    %9 = memref.load %arg0[%c2] : memref<4xf32, #tpu.memory_space<smem>>
    %10 = arith.mulf %9, %0 : f32
    %c3 = arith.constant 3 : index
    %11 = memref.load %arg0[%c3] : memref<4xf32, #tpu.memory_space<smem>>
    %12 = arith.mulf %11, %1 : f32
    %13 = arith.addf %10, %12 : f32
    %14 = arith.addf %13, %2 : f32
    %c0_3 = arith.constant 0 : index
    %15 = memref.load %arg1[%c0_3] : memref<4xf32, #tpu.memory_space<smem>>
    %c0_4 = arith.constant 0 : index
    %16 = memref.load %arg2[%c0_4] : memref<4xf32, #tpu.memory_space<smem>>
    %17 = arith.addf %15, %16 : f32
    %c0_5 = arith.constant 0 : index
    %18 = memref.load %arg3[%c0_5] : memref<4xf32, #tpu.memory_space<smem>>
    %19 = arith.addf %17, %18 : f32
    %c1_6 = arith.constant 1 : index
    %20 = memref.load %arg1[%c1_6] : memref<4xf32, #tpu.memory_space<smem>>
    %c1_7 = arith.constant 1 : index
    %21 = memref.load %arg2[%c1_7] : memref<4xf32, #tpu.memory_space<smem>>
    %22 = arith.addf %20, %21 : f32
    %c1_8 = arith.constant 1 : index
    %23 = memref.load %arg3[%c1_8] : memref<4xf32, #tpu.memory_space<smem>>
    %24 = arith.addf %22, %23 : f32
    %c2_9 = arith.constant 2 : index
    %25 = memref.load %arg1[%c2_9] : memref<4xf32, #tpu.memory_space<smem>>
    %c2_10 = arith.constant 2 : index
    %26 = memref.load %arg2[%c2_10] : memref<4xf32, #tpu.memory_space<smem>>
    %27 = arith.addf %25, %26 : f32
    %c2_11 = arith.constant 2 : index
    %28 = memref.load %arg3[%c2_11] : memref<4xf32, #tpu.memory_space<smem>>
    %29 = arith.addf %27, %28 : f32
    %c3_12 = arith.constant 3 : index
    %30 = memref.load %arg1[%c3_12] : memref<4xf32, #tpu.memory_space<smem>>
    %c3_13 = arith.constant 3 : index
    %31 = memref.load %arg2[%c3_13] : memref<4xf32, #tpu.memory_space<smem>>
    %32 = arith.addf %30, %31 : f32
    %c3_14 = arith.constant 3 : index
    %33 = memref.load %arg3[%c3_14] : memref<4xf32, #tpu.memory_space<smem>>
    %34 = arith.addf %32, %33 : f32
    %35 = arith.mulf %19, %0 : f32
    %36 = arith.mulf %24, %1 : f32
    %37 = arith.addf %35, %36 : f32
    %cst = arith.constant 3.000000e+00 : f32
    %38 = arith.mulf %cst, %2 : f32
    %39 = arith.addf %37, %38 : f32
    %40 = arith.mulf %29, %0 : f32
    %41 = arith.mulf %34, %1 : f32
    %42 = arith.addf %40, %41 : f32
    %cst_15 = arith.constant 3.000000e+00 : f32
    %43 = arith.mulf %cst_15, %2 : f32
    %44 = arith.addf %42, %43 : f32
    %45 = arith.addf %8, %39 : f32
    %46 = arith.addf %14, %44 : f32
    %47 = tpu.iota {dimensions = array<i32: 1>} : vector<1x2x2xi32>
    %48 = tpu.iota {dimensions = array<i32: 2>} : vector<1x2x2xi32>
    %c0_i32 = arith.constant 0 : i32
    %49 = vector.broadcast %c0_i32 : i32 to vector<1x2x2xi32>
    %50 = arith.cmpi eq, %47, %49 : vector<1x2x2xi32>
    %51 = vector.broadcast %45 : f32 to vector<1x2x2xf32>
    %52 = vector.broadcast %46 : f32 to vector<1x2x2xf32>
    %53 = arith.select %50, %51, %52 : vector<1x2x2xi1>, vector<1x2x2xf32>
    %c0_i32_16 = arith.constant 0 : i32
    %54 = vector.broadcast %c0_i32_16 : i32 to vector<1x2x2xi32>
    %55 = arith.cmpi eq, %48, %54 : vector<1x2x2xi32>
    %56 = vector.broadcast %8 : f32 to vector<1x2x2xf32>
    %57 = vector.broadcast %14 : f32 to vector<1x2x2xf32>
    %58 = arith.select %55, %56, %57 : vector<1x2x2xi1>, vector<1x2x2xf32>
    %59 = arith.addf %53, %58 : vector<1x2x2xf32>
    %c0_17 = arith.constant 0 : index
    %c0_18 = arith.constant 0 : index
    %c0_19 = arith.constant 0 : index
    %60 = vector.load %arg6[%c0_17, %c0_18, %c0_19] : memref<1x2x2xf32, #tpu.memory_space<vmem>>, vector<1x2x2xf32>
    tpu.vector_store %arg6[%c0_17, %c0_18, %c0_19], %59 {strides = array<i32>} : memref<1x2x2xf32, #tpu.memory_space<vmem>>, vector<1x2x2xf32>,
    return
  }
}

</mosaic_0001>

<llo_original>
// kernel: model_forward.1
$region0: #{model_forward.1}
  #allocation0 [shape = 'u32[]', space=smem, size = 0x4, offset = 0x4, fixed_abs, tag = 'smem constant byte address 0x4 - core index']
  #allocation1 [shape = 'u32[72,128]{1,0:T(1,128)}', space=vmem, size = 0x9000, scoped, tag = 'internal scratch']
  #allocation2 [shape = 'f32[1]{0:T(128)S(6)}', space=smem, size = 0x200, scoped, tag = 'scoped memory for model_forward.1']
  %s0 = inlined_call_operand.vmem [shape: f32[4], index: 0, kind: input, shape index: {}]
  %s1 = inlined_call_operand.vmem [shape: f32[4], index: 1, kind: input, shape index: {}]
  %s2 = inlined_call_operand.vmem [shape: f32[4], index: 2, kind: input, shape index: {}]
  %s3 = inlined_call_operand.vmem [shape: f32[4], index: 3, kind: input, shape index: {}]
  %s4 = inlined_call_operand.vmem [shape: f32[2], index: 4, kind: input, shape index: {}]
  %s5 = inlined_call_operand.<no memory space> [shape: f32[1], index: 5, kind: input, shape index: {}]
  %s6 = inlined_call_operand.hbm [shape: f32[1,2,2], index: 6, kind: output, shape index: {}]
  %s7 = sld [smem:[#allocation0]]
  $region54: #{model_forward.1} parent=0
    _
  %s9 = ssub.s32 1, %s7
  %s10 = scalar_select 0, %s9, %s7
  %11 = sst [smem:[#allocation2]] %s5
  $region1: #{model_forward.1} parent=0
    #allocation3 [shape = 'u8[512]{0}', space=smem, size = 0x200, scoped, tag = 'input window, operand 0, single buffered']
    #allocation4 [shape = 's32[1]{0}', space=sflag, size = 0x4, scoped, tag = 'scoped memory for model_forward.1']
    #allocation5 [shape = 's32[1]{0}', space=sflag, size = 0x4, scoped, tag = 'scoped memory for model_forward.1']
    #allocation6 [shape = 'u8[512]{0}', space=smem, size = 0x200, scoped, tag = 'input window, operand 1, single buffered']
    #allocation7 [shape = 's32[1]{0}', space=sflag, size = 0x4, scoped, tag = 'scoped memory for model_forward.1']
    #allocation8 [shape = 'u8[512]{0}', space=smem, size = 0x200, scoped, tag = 'input window, operand 2, single buffered']
    #allocation9 [shape = 'u8[512]{0}', space=smem, size = 0x200, scoped, tag = 'input window, operand 3, single buffered']
    #allocation10 [shape = 's32[1]{0}', space=sflag, size = 0x4, scoped, tag = 'scoped memory for model_forward.1']
    #allocation11 [shape = 'u8[512]{0}', space=smem, size = 0x200, scoped, tag = 'input window, operand 4, single buffered']
    #allocation12 [shape = 'u8[1024]{0}', space=vmem, size = 0x400, scoped, tag = 'output window, operand 0, single buffered']
    %12 = vsyncpa [#allocation5], 0
    %13 = vsyncpa [#allocation7], 0
    %14 = vsyncpa [#allocation10], 0
    %15 = vsyncpa [#allocation4], 0
    // Predicated region
    $region2: #{model_forward.1} parent=1 // pred_check
      _
    $region3: #{model_forward.1} parent=1 // pred_check_branch
      %17 = sbr.rel (0) target = $region5
    $region4: #{model_forward.1} parent=1 // pred_region
      %19 = vsyncadd [#allocation5], 0
      %s21 = sshll.u32 %s0, 4
      %s22 = int_to_ptr.vmem [resolvable:$true] %s21
      %24 = dma.vmem_to_smem %s22, 16, [#allocation3], [#allocation5]
    $region5: #{model_forward.1} parent=1 // pred_fallthru
      _
    // Predicated region
    $region6: #{model_forward.1} parent=1 // pred_check
      _
    $region7: #{model_forward.1} parent=1 // pred_check_branch
      %26 = sbr.rel (0) target = $region9
    $region8: #{model_forward.1} parent=1 // pred_region
      %28 = vsyncadd [#allocation7], 0
      %s30 = sshll.u32 %s1, 4
      %s31 = int_to_ptr.vmem [resolvable:$true] %s30
      %33 = dma.vmem_to_smem %s31, 16, [#allocation6], [#allocation7]
    $region9: #{model_forward.1} parent=1 // pred_fallthru
      _
    // Predicated region
    $region10: #{model_forward.1} parent=1 // pred_check
      _
    $region11: #{model_forward.1} parent=1 // pred_check_branch
      %35 = sbr.rel (0) target = $region13
    $region12: #{model_forward.1} parent=1 // pred_region
      %37 = vsyncadd [#allocation7], 0
      %s39 = sshll.u32 %s2, 4
      %s40 = int_to_ptr.vmem [resolvable:$true] %s39
      %42 = dma.vmem_to_smem %s40, 16, [#allocation8], [#allocation7]
    $region13: #{model_forward.1} parent=1 // pred_fallthru
      _
    // Predicated region
    $region14: #{model_forward.1} parent=1 // pred_check
      _
    $region15: #{model_forward.1} parent=1 // pred_check_branch
      %44 = sbr.rel (0) target = $region17
    $region16: #{model_forward.1} parent=1 // pred_region
      %46 = vsyncadd [#allocation10], 0
      %s48 = sshll.u32 %s3, 4
      %s49 = int_to_ptr.vmem [resolvable:$true] %s48
      %51 = dma.vmem_to_smem %s49, 16, [#allocation9], [#allocation10]
    $region17: #{model_forward.1} parent=1 // pred_fallthru
      _
    // Predicated region
    $region18: #{model_forward.1} parent=1 // pred_check
      _
    $region19: #{model_forward.1} parent=1 // pred_check_branch
      %53 = sbr.rel (0) target = $region21
    $region20: #{model_forward.1} parent=1 // pred_region
      %55 = vsyncadd [#allocation10], 0
      %s57 = sshll.u32 %s4, 4
      %s58 = int_to_ptr.vmem [resolvable:$true] %s57
      %60 = dma.vmem_to_smem %s58, 16, [#allocation11], [#allocation10]
    $region21: #{model_forward.1} parent=1 // pred_fallthru
      _
    // Predicated region
    $region22: #{model_forward.1} parent=1 // pred_check
      _
    $region23: #{model_forward.1} parent=1 // pred_check_branch
      %62 = sbr.rel (0) target = $region25
    $region24: #{model_forward.1} parent=1 // pred_region
      _
    $region25: #{model_forward.1} parent=1 // pred_fallthru
      _
    // Predicated region
    $region26: #{model_forward.1} parent=1 // pred_check
      _
    $region27: #{model_forward.1} parent=1 // pred_check_branch
      %64 = sbr.rel (0) target = $region29
    $region28: #{model_forward.1} parent=1 // pred_region
      %66 = dma.done [#allocation5], 16
    $region29: #{model_forward.1} parent=1 // pred_fallthru
      _
    // Predicated region
    $region30: #{model_forward.1} parent=1 // pred_check
      _
    $region31: #{model_forward.1} parent=1 // pred_check_branch
      %68 = sbr.rel (0) target = $region33
    $region32: #{model_forward.1} parent=1 // pred_region
      %70 = dma.done [#allocation7], 16
    $region33: #{model_forward.1} parent=1 // pred_fallthru
      _
    // Predicated region
    $region34: #{model_forward.1} parent=1 // pred_check
      _
    $region35: #{model_forward.1} parent=1 // pred_check_branch
      %72 = sbr.rel (0) target = $region37
    $region36: #{model_forward.1} parent=1 // pred_region
      %74 = dma.done [#allocation7], 16
    $region37: #{model_forward.1} parent=1 // pred_fallthru
      _
    // Predicated region
    $region38: #{model_forward.1} parent=1 // pred_check
      _
    $region39: #{model_forward.1} parent=1 // pred_check_branch
      %76 = sbr.rel (0) target = $region41
    $region40: #{model_forward.1} parent=1 // pred_region
      %78 = dma.done [#allocation10], 16
    $region41: #{model_forward.1} parent=1 // pred_fallthru
      _
    // Predicated region
    $region42: #{model_forward.1} parent=1 // pred_check
      _
    $region43: #{model_forward.1} parent=1 // pred_check_branch
      %80 = sbr.rel (0) target = $region45
    $region44: #{model_forward.1} parent=1 // pred_region
      %82 = dma.done [#allocation10], 16
    $region45: #{model_forward.1} parent=1 // pred_fallthru
      _
    %83 = sfence
    %s84 = sld [smem:[#allocation11]]
    %s85 = sld [smem:[#allocation11 + $0x1]]
    %s86 = sld [smem:[#allocation2]]
    %s87 = sld [smem:[#allocation3]]
    %s88 = smul.f32 %s87, %s84
    %s89 = sld [smem:[#allocation3 + $0x1]]
    %s90 = smul.f32 %s89, %s85
    %s91 = sadd.f32 %s88, %s90
    %s92 = sadd.f32 %s91, %s86
    %s93 = sld [smem:[#allocation3 + $0x2]]
    %s94 = smul.f32 %s93, %s84
    %s95 = sld [smem:[#allocation3 + $0x3]]
    %s96 = smul.f32 %s95, %s85
    %s97 = sadd.f32 %s94, %s96
    %s98 = sadd.f32 %s97, %s86
    %s99 = sld [smem:[#allocation6]]
    %s100 = sld [smem:[#allocation8]]
    %s101 = sadd.f32 %s99, %s100
    %s102 = sld [smem:[#allocation9]]
    %s103 = sadd.f32 %s101, %s102
    %s104 = sld [smem:[#allocation6 + $0x1]]
    %s105 = sld [smem:[#allocation8 + $0x1]]
    %s106 = sadd.f32 %s104, %s105
    %s107 = sld [smem:[#allocation9 + $0x1]]
    %s108 = sadd.f32 %s106, %s107
    %s109 = sld [smem:[#allocation6 + $0x2]]
    %s110 = sld [smem:[#allocation8 + $0x2]]
    %s111 = sadd.f32 %s109, %s110
    %s112 = sld [smem:[#allocation9 + $0x2]]
    %s113 = sadd.f32 %s111, %s112
    %s114 = sld [smem:[#allocation6 + $0x3]]
    %s115 = sld [smem:[#allocation8 + $0x3]]
    %s116 = sadd.f32 %s114, %s115
    %s117 = sld [smem:[#allocation9 + $0x3]]
    %s118 = sadd.f32 %s116, %s117
    %s119 = smul.f32 %s103, %s84
    %s120 = smul.f32 %s108, %s85
    %s121 = sadd.f32 %s119, %s120
    %s122 = smul.f32 %s86, 3.0
    %s123 = sadd.f32 %s121, %s122
    %s124 = smul.f32 %s113, %s84
    %s125 = smul.f32 %s118, %s85
    %s126 = sadd.f32 %s124, %s125
    %s127 = sadd.f32 %s126, %s122
    %s128 = sadd.f32 %s92, %s123
    %s129 = sadd.f32 %s98, %s127
    %v130 = vlaneseq
    %v131 = vshrl.u32 %v130, 7
    %v132 = vlaneseq
    %v133 = vand.u32 %v132, 127
    %vm134 = vcmp.eq.s32.totalorder %v131, 0
    %v135 = vstv %s128
    %v136 = vstv %s129
    %v137 = vsel %vm134, %v135, %v136
    %vm138 = vcmp.eq.s32.totalorder %v133, 0
    %v139 = vstv %s92
    %v140 = vstv %s98
    %v141 = vsel %vm138, %v139, %v140
    %v142 = vadd.f32 %v137, %v141
    %vm143 = vcmask 9216
    %144 = vst.msk [vmem:[#allocation12] sm:$0x3] %vm143, %v142
    // Predicated region
    $region46: #{model_forward.1} parent=1 // pred_check
      _
    $region47: #{model_forward.1} parent=1 // pred_check_branch
      %146 = sbr.rel (0) target = $region49
    $region48: #{model_forward.1} parent=1 // pred_region
      %148 = vsyncadd [#allocation4], 0
      %s150 = sshll.u32 [#allocation12], 4
      %s151 = int_to_ptr.vmem [resolvable:$true] %s150
      %s152 = sshll.u32 %s6, 4
      %s153 = int_to_ptr.hbm [resolvable:$true] %s152
      %155 = dma.vmem_to_hbm [thread:$0]  %s151, 32, %s153, [#allocation4]
    $region49: #{model_forward.1} parent=1 // pred_fallthru
      _
    // Predicated region
    $region50: #{model_forward.1} parent=1 // pred_check
      _
    $region51: #{model_forward.1} parent=1 // pred_check_branch
      %157 = sbr.rel (0) target = $region53
    $region52: #{model_forward.1} parent=1 // pred_region
      %159 = dma.done [#allocation4], 32
    $region53: #{model_forward.1} parent=1 // pred_fallthru
      _
    %160 = vsyncpa [#allocation4], 1
    %161 = vsyncpa [#allocation5], 1
    %162 = vsyncpa [#allocation7], 1
    %163 = vsyncpa [#allocation10], 1

</llo_original>
